<compile_context>
chip_gen: v5e
topology: v5e:2x2
jax: 0.10.0
libtpu: 0.0.40
codegen_flags: <defaults>
</compile_context>

<pallas_src>
import jax
import jax.numpy as jnp
from jax.experimental import pallas as pl
from jax.experimental.pallas import tpu as pltpu


def _cond_prompt_kernel(xnum_ref, g_ref, w_ref, b_ref, out_ref):
    """out[b, t, :] = x_num[b, t] * W[t, :] + B[t, :] + G[b, t, :]  (pure VPU)."""
    x = xnum_ref[...]                        # [tb, ntp]            f32
    w = w_ref[...]                           # [ntp, d_model]       f32 (grid-invariant)
    b = b_ref[...]                           # [ntp, d_model]       f32 (grid-invariant)
    g = g_ref[...]                           # [tb, ntp, d_model]   f32 (gathered emb)
    out = x[:, :, None] * w[None, :, :] + (b[None, :, :] + g)
    out_ref[...] = out.astype(out_ref.dtype)  # single full padded-block store


def _round_up(x, m):
    return ((x + m - 1) // m) * m


def conditional_prompt_forward(x_num, x_cat,
                               num_weight, num_bias, num_proj,
                               emb_table, category_offsets, cat_bias, cat_proj,
                               *, tb_max=256,
                               vmem_budget_bytes=32 * 1024 * 1024):
    """Pallas implementation of ConditionalPrompt.forward (both branches present)."""
    f32 = jnp.float32
    B, n_num = x_num.shape
    n_cat = x_cat.shape[1]
    d_model = num_proj.shape[1]
    n_tok = n_num + n_cat
    n_tok_pad = _round_up(n_tok, 8)
    pad_tok = n_tok_pad - n_tok
    total_cat = emb_table.shape[0]
    zero_row = total_cat                        # appended all-zero row index

    # ---- fold the projections into the parameters (once per call, tiny) ----
    w_fold = num_weight.astype(f32) @ num_proj.astype(f32)       # [n_num, dm]
    bnum_fold = num_bias.astype(f32) @ num_proj.astype(f32)      # [n_num, dm]
    bcat_fold = cat_bias.astype(f32) @ cat_proj.astype(f32)      # [n_cat, dm]
    emb_fold = emb_table.astype(f32) @ cat_proj.astype(f32)      # [total_cat, dm]

    # Per-token folded scale / bias (zero rows for the "other" branch + padding).
    w_all = jnp.concatenate(
        [w_fold, jnp.zeros((n_cat + pad_tok, d_model), f32)], axis=0)
    b_all = jnp.concatenate(
        [bnum_fold, bcat_fold, jnp.zeros((pad_tok, d_model), f32)], axis=0)

    # ---- embedding gather on the PROJECTED table (wrapper-side XLA gather) --
    emb_aug = jnp.concatenate([emb_fold, jnp.zeros((1, d_model), f32)], axis=0)
    cat_idx = x_cat.astype(jnp.int32) + category_offsets[None].astype(jnp.int32)
    idx_pad = jnp.concatenate(
        [jnp.full((B, n_num), zero_row, jnp.int32), cat_idx,
         jnp.full((B, pad_tok), zero_row, jnp.int32)], axis=1)    # [B, ntp]
    g_all = emb_aug[idx_pad]                                      # [B, ntp, dm]

    xnum_pad = jnp.concatenate(
        [x_num.astype(f32), jnp.zeros((B, n_cat + pad_tok), f32)], axis=1)

    # ---- batch tiling (8-aligned tiles, VMEM-budgeted, >=2 tiles for v7x) ---
    tb_max = max(8, (tb_max // 8) * 8)
    row_bytes = n_tok_pad * d_model * 4
    # double-buffered G-in + out blocks dominate VMEM: 4 * tb * row_bytes
    tb_fit = max(8, (vmem_budget_bytes // (4 * row_bytes)) // 8 * 8)
    tb_cap = min(tb_max, tb_fit)

    b_pad8 = _round_up(B, 8)
    tb = min(tb_cap, b_pad8)
    if tb >= b_pad8 and b_pad8 >= 16:
        tb = _round_up(b_pad8 // 2, 8)   # split across >=2 parallel tiles (megacore)
    b_pad = _round_up(b_pad8, tb)
    num_tiles = b_pad // tb

    if b_pad != B:
        xnum_pad = jnp.concatenate(
            [xnum_pad, jnp.zeros((b_pad - B, n_tok_pad), f32)], axis=0)
        g_all = jnp.concatenate(
            [g_all, jnp.zeros((b_pad - B, n_tok_pad, d_model), f32)], axis=0)

    grid_spec = pltpu.PrefetchScalarGridSpec(
        num_scalar_prefetch=0,
        grid=(num_tiles,),
        in_specs=[
            pl.BlockSpec((tb, n_tok_pad), lambda b: (b, 0)),              # x_num
            pl.BlockSpec((tb, n_tok_pad, d_model), lambda b: (b, 0, 0)),  # gathered emb
            pl.BlockSpec((n_tok_pad, d_model), lambda b: (0, 0)),         # folded scale
            pl.BlockSpec((n_tok_pad, d_model), lambda b: (0, 0)),         # folded bias
        ],
        out_specs=pl.BlockSpec((tb, n_tok_pad, d_model), lambda b: (b, 0, 0)),
    )

    out = pl.pallas_call(
        _cond_prompt_kernel,
        out_shape=jax.ShapeDtypeStruct((b_pad, n_tok_pad, d_model), f32),
        grid_spec=grid_spec,
        compiler_params=pltpu.CompilerParams(
            dimension_semantics=("parallel",),
            vmem_limit_bytes=48 * 1024 * 1024),
    )(xnum_pad, g_all, w_all, b_all)

    # Drop batch/token padding in the wrapper (XLA slice), not in-kernel.
    return out[:B, :n_tok, :]


def _xavier_uniform(key, shape):
    fan_in, fan_out = shape[-2], shape[-1]
    bound = (6.0 / (fan_in + fan_out)) ** 0.5
    return jax.random.uniform(key, shape, jnp.float32, -bound, bound)


def _reference(x_num, x_cat, num_weight, num_bias, num_proj,
               emb_table, category_offsets, cat_bias, cat_proj):
    ref_num = (num_weight[None] * x_num[..., None] + num_bias[None]) @ num_proj
    ref_cat = (emb_table[x_cat + category_offsets[None]] + cat_bias[None]) @ cat_proj
    return jnp.concatenate([ref_num, ref_cat], axis=1)


if __name__ == "__main__":
    # Small, module-consistent shapes.
    B = 2
    n_num_feature = 4
    cat_cardinalities = [3, 5, 7]
    n_cat = len(cat_cardinalities)
    d_hidden = 16
    d_model = 32
    total_cat = sum(cat_cardinalities)

    key = jax.random.PRNGKey(0)
    keys = jax.random.split(key, 8)

    # Deterministic synthetic parameters (shapes follow the module __init__).
    num_weight = _xavier_uniform(keys[0], (n_num_feature, d_hidden))
    num_bias = _xavier_uniform(keys[1], (n_num_feature, d_hidden))
    num_proj_w = _xavier_uniform(keys[2], (d_model, d_hidden))   # nn.Linear weight
    num_proj = num_proj_w.T                                      # [d_hidden, d_model]

    emb_table = jax.random.normal(keys[3], (total_cat, d_hidden), jnp.float32)
    cat_bias = _xavier_uniform(keys[4], (n_cat, d_hidden))
    cat_proj_w = _xavier_uniform(keys[5], (d_model, d_hidden))
    cat_proj = cat_proj_w.T
    category_offsets = jnp.cumsum(
        jnp.array([0] + cat_cardinalities[:-1], dtype=jnp.int32))

    # Inputs.
    x_num = jax.random.normal(keys[6], (B, n_num_feature), jnp.float32)
    x_cat = jnp.stack(
        [jax.random.randint(k, (B,), 0, c)
         for k, c in zip(jax.random.split(keys[7], n_cat), cat_cardinalities)],
        axis=1).astype(jnp.int32)                                # [B, n_cat]

    out = conditional_prompt_forward(
        x_num, x_cat, num_weight, num_bias, num_proj,
        emb_table, category_offsets, cat_bias, cat_proj)
    out = jax.block_until_ready(out)

    ref = _reference(x_num, x_cat, num_weight, num_bias, num_proj,
                     emb_table, category_offsets, cat_bias, cat_proj)
    assert out.shape == (B, n_num_feature + n_cat, d_model)
    # Projection fold-through changes FP associativity slightly vs the reference.
    assert jnp.allclose(out, ref, atol=1e-4, rtol=1e-4)

    # Second check: exercise multi-tile grid + batch/token padding path.
    B2 = 20
    kx, kc = jax.random.split(keys[6], 2)
    x_num2 = jax.random.normal(kx, (B2, n_num_feature), jnp.float32)
    x_cat2 = jnp.stack(
        [jax.random.randint(k, (B2,), 0, c)
         for k, c in zip(jax.random.split(kc, n_cat), cat_cardinalities)],
        axis=1).astype(jnp.int32)
    out2 = conditional_prompt_forward(
        x_num2, x_cat2, num_weight, num_bias, num_proj,
        emb_table, category_offsets, cat_bias, cat_proj, tb_max=8)
    out2 = jax.block_until_ready(out2)
    ref2 = _reference(x_num2, x_cat2, num_weight, num_bias, num_proj,
                      emb_table, category_offsets, cat_bias, cat_proj)
    assert out2.shape == (B2, n_num_feature + n_cat, d_model)
    assert jnp.allclose(out2, ref2, atol=1e-4, rtol=1e-4)

    print("KERNEL_OK")
</pallas_src>

<mosaic_0001>
module attributes {stable_mosaic.version = 11 : i64} {
  func.func @_cond_prompt_kernel(%arg0: i32, %arg1: memref<8x8xf32, #tpu.memory_space<vmem>>, %arg2: memref<8x8x32xf32, #tpu.memory_space<vmem>>, %arg3: memref<8x32xf32, #tpu.memory_space<vmem>>, %arg4: memref<8x32xf32, #tpu.memory_space<vmem>>, %arg5: memref<8x8x32xf32, #tpu.memory_space<vmem>>) attributes {dimension_semantics = [#tpu.dimension_semantics<parallel>], iteration_bounds = array<i64: 1>, scalar_prefetch = 0 : i64, scratch_operands = 0 : i64, tpu.core_type = #tpu.core_type<tc>, window_params = [{transform_indices = @transform_0, window_bounds = array<i64: 8, 8>}, {transform_indices = @transform_1, window_bounds = array<i64: 8, 8, 32>}, {pipeline_mode = #tpu.pipeline_mode<synchronous>, transform_indices = @transform_2, window_bounds = array<i64: 8, 32>}, {pipeline_mode = #tpu.pipeline_mode<synchronous>, transform_indices = @transform_3, window_bounds = array<i64: 8, 32>}, {transform_indices = @transform_4, window_bounds = array<i64: 8, 8, 32>}]} {
    %c0 = arith.constant 0 : index
    %c0_0 = arith.constant 0 : index
    %0 = vector.load %arg1[%c0, %c0_0] : memref<8x8xf32, #tpu.memory_space<vmem>>, vector<8x8xf32>
    %c0_1 = arith.constant 0 : index
    %c0_2 = arith.constant 0 : index
    %1 = vector.load %arg3[%c0_1, %c0_2] : memref<8x32xf32, #tpu.memory_space<vmem>>, vector<8x32xf32>
    %c0_3 = arith.constant 0 : index
    %c0_4 = arith.constant 0 : index
    %2 = vector.load %arg4[%c0_3, %c0_4] : memref<8x32xf32, #tpu.memory_space<vmem>>, vector<8x32xf32>
    %c0_5 = arith.constant 0 : index
    %c0_6 = arith.constant 0 : index
    %c0_7 = arith.constant 0 : index
    %3 = vector.load %arg2[%c0_5, %c0_6, %c0_7] : memref<8x8x32xf32, #tpu.memory_space<vmem>>, vector<8x8x32xf32>
    %4 = vector.shape_cast %0 : vector<8x8xf32> to vector<8x8x1xf32>
    %5 = vector.shape_cast %1 : vector<8x32xf32> to vector<1x8x32xf32>
    %6 = vector.broadcast %4 : vector<8x8x1xf32> to vector<8x8x32xf32>
    %7 = vector.broadcast %5 : vector<1x8x32xf32> to vector<8x8x32xf32>
    %8 = arith.mulf %6, %7 : vector<8x8x32xf32>
    %9 = vector.shape_cast %2 : vector<8x32xf32> to vector<1x8x32xf32>
    %10 = vector.broadcast %9 : vector<1x8x32xf32> to vector<8x8x32xf32>
    %11 = arith.addf %10, %3 : vector<8x8x32xf32>
    %12 = arith.addf %8, %11 : vector<8x8x32xf32>
    %c0_8 = arith.constant 0 : index
    %c0_9 = arith.constant 0 : index
    %c0_10 = arith.constant 0 : index
    %13 = vector.load %arg5[%c0_8, %c0_9, %c0_10] : memref<8x8x32xf32, #tpu.memory_space<vmem>>, vector<8x8x32xf32>
    tpu.vector_store %arg5[%c0_8, %c0_9, %c0_10], %12 {strides = array<i32>} : memref<8x8x32xf32, #tpu.memory_space<vmem>>, vector<8x8x32xf32>,
    return
  }
  func.func @transform_0(%arg0: i32) -> (i32, i32) {
    %c0_i32 = arith.constant 0 : i32
    %c0_i32_0 = arith.constant 0 : i32
    return %arg0, %c0_i32 : i32, i32
  }
  func.func @transform_1(%arg0: i32) -> (i32, i32, i32) {
    %c0_i32 = arith.constant 0 : i32
    %c0_i32_0 = arith.constant 0 : i32
    %c0_i32_1 = arith.constant 0 : i32
    return %arg0, %c0_i32, %c0_i32_0 : i32, i32, i32
  }
  func.func @transform_2(%arg0: i32) -> (i32, i32) {
    %c0_i32 = arith.constant 0 : i32
    %c0_i32_0 = arith.constant 0 : i32
    %c0_i32_1 = arith.constant 0 : i32
    return %c0_i32, %c0_i32_0 : i32, i32
  }
  func.func @transform_3(%arg0: i32) -> (i32, i32) {
    %c0_i32 = arith.constant 0 : i32
    %c0_i32_0 = arith.constant 0 : i32
    %c0_i32_1 = arith.constant 0 : i32
    return %c0_i32, %c0_i32_0 : i32, i32
  }
  func.func @transform_4(%arg0: i32) -> (i32, i32, i32) {
    %c0_i32 = arith.constant 0 : i32
    %c0_i32_0 = arith.constant 0 : i32
    %c0_i32_1 = arith.constant 0 : i32
    return %arg0, %c0_i32, %c0_i32_0 : i32, i32, i32
  }
}

</mosaic_0001>

<llo_original>
// kernel: tpu_custom_call.1
$region0: #{tpu_custom_call.1}
  #allocation0 [shape = 'u32[]', space=smem, size = 0x4, offset = 0x4, fixed_abs, tag = 'smem constant byte address 0x4 - core index']
  #allocation1 [shape = 'u32[72,128]{1,0:T(1,128)}', space=vmem, size = 0x9000, scoped, tag = 'internal scratch']
  %s0 = inlined_call_operand.hbm [shape: f32[8,8], index: 0, kind: input, shape index: {}]
  %s1 = inlined_call_operand.hbm [shape: f32[8,8,32], index: 1, kind: input, shape index: {}]
  %s2 = inlined_call_operand.hbm [shape: f32[8,32], index: 2, kind: input, shape index: {}]
  %s3 = inlined_call_operand.hbm [shape: f32[8,32], index: 3, kind: input, shape index: {}]
  %s4 = inlined_call_operand.hbm [shape: f32[8,8,32], index: 4, kind: output, shape index: {}]
  %s5 = sld [smem:[#allocation0]]
  $region42: #{tpu_custom_call.1} parent=0
    _
  %s7 = ssub.s32 1, %s5
  %s8 = scalar_select 0, %s7, %s5
  $region1: #{tpu_custom_call.1} parent=0
    #allocation2 [shape = 'u8[4096]{0}', space=vmem, size = 0x1000, scoped, tag = 'input window, operand 0, single buffered']
    #allocation3 [shape = 's32[1]{0}', space=sflag, size = 0x4, scoped, tag = 'scoped memory for tpu_custom_call.1']
    #allocation4 [shape = 's32[1]{0}', space=sflag, size = 0x4, scoped, tag = 'scoped memory for tpu_custom_call.1']
    #allocation5 [shape = 'u8[32768]{0}', space=vmem, size = 0x8000, scoped, tag = 'input window, operand 1, single buffered']
    #allocation6 [shape = 's32[1]{0}', space=sflag, size = 0x4, scoped, tag = 'scoped memory for tpu_custom_call.1']
    #allocation7 [shape = 'u8[4096]{0}', space=vmem, size = 0x1000, scoped, tag = 'input window, operand 2, single buffered']
    #allocation8 [shape = 'u8[4096]{0}', space=vmem, size = 0x1000, scoped, tag = 'input window, operand 3, single buffered']
    #allocation9 [shape = 's32[1]{0}', space=sflag, size = 0x4, scoped, tag = 'scoped memory for tpu_custom_call.1']
    #allocation10 [shape = 'u8[32768]{0}', space=vmem, size = 0x8000, scoped, tag = 'output window, operand 0, single buffered']
    %9 = vsyncpa [#allocation3], 0
    %10 = vsyncpa [#allocation6], 0
    %11 = vsyncpa [#allocation9], 0
    %12 = vsyncpa [#allocation4], 0
    // Predicated region
    $region2: #{tpu_custom_call.1} parent=1 // pred_check
      _
    $region3: #{tpu_custom_call.1} parent=1 // pred_check_branch
      %14 = sbr.rel (0) target = $region5
    $region4: #{tpu_custom_call.1} parent=1 // pred_region
      %16 = vsyncadd [#allocation3], 0
      %s18 = sshll.u32 %s0, 4
      %s19 = int_to_ptr.hbm [resolvable:$true] %s18
      %s20 = sshll.u32 [#allocation2], 4
      %s21 = int_to_ptr.vmem [resolvable:$true] %s20
      %23 = dma.hbm_to_vmem [thread:$0]  %s19, 128, %s21, [#allocation3]
    $region5: #{tpu_custom_call.1} parent=1 // pred_fallthru
      _
    // Predicated region
    $region6: #{tpu_custom_call.1} parent=1 // pred_check
      _
    $region7: #{tpu_custom_call.1} parent=1 // pred_check_branch
      %25 = sbr.rel (0) target = $region9
    $region8: #{tpu_custom_call.1} parent=1 // pred_region
      %27 = vsyncadd [#allocation6], 0
      %s28 = sshll.u32 %s1, 4
      %s29 = int_to_ptr.hbm [resolvable:$true] %s28
      %s30 = sshll.u32 [#allocation5], 4
      %s31 = int_to_ptr.vmem [resolvable:$true] %s30
      %36 = dma.hbm_to_vmem [thread:$0]  %s29, 1024, %s31, [#allocation6], 128, 128, 8
    $region9: #{tpu_custom_call.1} parent=1 // pred_fallthru
      _
    // Predicated region
    $region10: #{tpu_custom_call.1} parent=1 // pred_check
      _
    $region11: #{tpu_custom_call.1} parent=1 // pred_check_branch
      %38 = sbr.rel (0) target = $region13
    $region12: #{tpu_custom_call.1} parent=1 // pred_region
      %40 = vsyncadd [#allocation6], 0
      %s42 = sshll.u32 %s2, 4
      %s43 = int_to_ptr.hbm [resolvable:$true] %s42
      %s44 = sshll.u32 [#allocation7], 4
      %s45 = int_to_ptr.vmem [resolvable:$true] %s44
      %47 = dma.hbm_to_vmem [thread:$0]  %s43, 128, %s45, [#allocation6]
    $region13: #{tpu_custom_call.1} parent=1 // pred_fallthru
      _
    // Predicated region
    $region14: #{tpu_custom_call.1} parent=1 // pred_check
      _
    $region15: #{tpu_custom_call.1} parent=1 // pred_check_branch
      %49 = sbr.rel (0) target = $region17
    $region16: #{tpu_custom_call.1} parent=1 // pred_region
      %51 = vsyncadd [#allocation9], 0
      %s53 = sshll.u32 %s3, 4
      %s54 = int_to_ptr.hbm [resolvable:$true] %s53
      %s55 = sshll.u32 [#allocation8], 4
      %s56 = int_to_ptr.vmem [resolvable:$true] %s55
      %58 = dma.hbm_to_vmem [thread:$0]  %s54, 128, %s56, [#allocation9]
    $region17: #{tpu_custom_call.1} parent=1 // pred_fallthru
      _
    // Predicated region
    $region18: #{tpu_custom_call.1} parent=1 // pred_check
      _
    $region19: #{tpu_custom_call.1} parent=1 // pred_check_branch
      %60 = sbr.rel (0) target = $region21
    $region20: #{tpu_custom_call.1} parent=1 // pred_region
      %62 = dma.done [#allocation3], 128
    $region21: #{tpu_custom_call.1} parent=1 // pred_fallthru
      _
    // Predicated region
    $region22: #{tpu_custom_call.1} parent=1 // pred_check
      _
    $region23: #{tpu_custom_call.1} parent=1 // pred_check_branch
      %64 = sbr.rel (0) target = $region25
    $region24: #{tpu_custom_call.1} parent=1 // pred_region
      %66 = dma.done [#allocation6], 1024
    $region25: #{tpu_custom_call.1} parent=1 // pred_fallthru
      _
    // Predicated region
    $region26: #{tpu_custom_call.1} parent=1 // pred_check
      _
    $region27: #{tpu_custom_call.1} parent=1 // pred_check_branch
      %68 = sbr.rel (0) target = $region29
    $region28: #{tpu_custom_call.1} parent=1 // pred_region
      %70 = dma.done [#allocation6], 128
    $region29: #{tpu_custom_call.1} parent=1 // pred_fallthru
      _
    // Predicated region
    $region30: #{tpu_custom_call.1} parent=1 // pred_check
      _
    $region31: #{tpu_custom_call.1} parent=1 // pred_check_branch
      %72 = sbr.rel (0) target = $region33
    $region32: #{tpu_custom_call.1} parent=1 // pred_region
      %74 = dma.done [#allocation9], 128
    $region33: #{tpu_custom_call.1} parent=1 // pred_fallthru
      _
    %v75 = vld [vmem:[#allocation2] sm:$0xff]
    %v76 = vld [vmem:[#allocation7] sm:$0xff]
    %v77 = vld [vmem:[#allocation8] sm:$0xff]
    %v78 = vld [vmem:[#allocation5] sm:$0xff]
    %v79 = vld [vmem:[#allocation5 + $0x8] sm:$0xff]
    %v80 = vld [vmem:[#allocation5 + $0x10] sm:$0xff]
    %v81 = vld [vmem:[#allocation5 + $0x18] sm:$0xff]
    %v82 = vld [vmem:[#allocation5 + $0x20] sm:$0xff]
    %v83 = vld [vmem:[#allocation5 + $0x28] sm:$0xff]
    %v84 = vld [vmem:[#allocation5 + $0x30] sm:$0xff]
    %v85 = vld [vmem:[#allocation5 + $0x38] sm:$0xff]
    %v86 = vperm.slane %v75, 0
    %v87 = vlaneseq
    %v88 = vshrl.u32 %v87, 7
    %90 = vset.pattern.permute.xlu0 %v88
    %91 = vperm.xlu0 %90, %v86
    %v92 = vpop.permute.xlu0 %91
    %v93 = vperm.slane %v75, 1
    %v94 = vlaneseq
    %v95 = vshrl.u32 %v94, 7
    %97 = vset.pattern.permute.xlu0 %v95
    %98 = vperm.xlu0 %97, %v93
    %v99 = vpop.permute.xlu0 %98
    %v100 = vperm.slane %v75, 2
    %v101 = vlaneseq
    %v102 = vshrl.u32 %v101, 7
    %104 = vset.pattern.permute.xlu0 %v102
    %105 = vperm.xlu0 %104, %v100
    %v106 = vpop.permute.xlu0 %105
    %v107 = vperm.slane %v75, 3
    %v108 = vlaneseq
    %v109 = vshrl.u32 %v108, 7
    %111 = vset.pattern.permute.xlu0 %v109
    %112 = vperm.xlu0 %111, %v107
    %v113 = vpop.permute.xlu0 %112
    %v114 = vperm.slane %v75, 4
    %v115 = vlaneseq
    %v116 = vshrl.u32 %v115, 7
    %118 = vset.pattern.permute.xlu0 %v116
    %119 = vperm.xlu0 %118, %v114
    %v120 = vpop.permute.xlu0 %119
    %v121 = vperm.slane %v75, 5
    %v122 = vlaneseq
    %v123 = vshrl.u32 %v122, 7
    %125 = vset.pattern.permute.xlu0 %v123
    %126 = vperm.xlu0 %125, %v121
    %v127 = vpop.permute.xlu0 %126
    %v128 = vperm.slane %v75, 6
    %v129 = vlaneseq
    %v130 = vshrl.u32 %v129, 7
    %132 = vset.pattern.permute.xlu0 %v130
    %133 = vperm.xlu0 %132, %v128
    %v134 = vpop.permute.xlu0 %133
    %v135 = vperm.slane %v75, 7
    %v136 = vlaneseq
    %v137 = vshrl.u32 %v136, 7
    %139 = vset.pattern.permute.xlu0 %v137
    %140 = vperm.xlu0 %139, %v135
    %v141 = vpop.permute.xlu0 %140
    %v142 = vmul.f32 %v92, %v76
    %v143 = vmul.f32 %v99, %v76
    %v144 = vmul.f32 %v106, %v76
    %v145 = vmul.f32 %v113, %v76
    %v146 = vmul.f32 %v120, %v76
    %v147 = vmul.f32 %v127, %v76
    %v148 = vmul.f32 %v134, %v76
    %v149 = vmul.f32 %v141, %v76
    %v150 = vadd.f32 %v77, %v78
    %v151 = vadd.f32 %v77, %v79
    %v152 = vadd.f32 %v77, %v80
    %v153 = vadd.f32 %v77, %v81
    %v154 = vadd.f32 %v77, %v82
    %v155 = vadd.f32 %v77, %v83
    %v156 = vadd.f32 %v77, %v84
    %v157 = vadd.f32 %v77, %v85
    %v158 = vadd.f32 %v142, %v150
    %v159 = vadd.f32 %v143, %v151
    %v160 = vadd.f32 %v144, %v152
    %v161 = vadd.f32 %v145, %v153
    %v162 = vadd.f32 %v146, %v154
    %v163 = vadd.f32 %v147, %v155
    %v164 = vadd.f32 %v148, %v156
    %v165 = vadd.f32 %v149, %v157
    %vm166 = vcmask 261120
    %167 = vst.msk [vmem:[#allocation10] sm:$0xff] %vm166, %v158
    %168 = vst.msk [vmem:[#allocation10 + $0x8] sm:$0xff] %vm166, %v159
    %169 = vst.msk [vmem:[#allocation10 + $0x10] sm:$0xff] %vm166, %v160
    %170 = vst.msk [vmem:[#allocation10 + $0x18] sm:$0xff] %vm166, %v161
    %171 = vst.msk [vmem:[#allocation10 + $0x20] sm:$0xff] %vm166, %v162
    %172 = vst.msk [vmem:[#allocation10 + $0x28] sm:$0xff] %vm166, %v163
    %173 = vst.msk [vmem:[#allocation10 + $0x30] sm:$0xff] %vm166, %v164
    %174 = vst.msk [vmem:[#allocation10 + $0x38] sm:$0xff] %vm166, %v165
    // Predicated region
    $region34: #{tpu_custom_call.1} parent=1 // pred_check
      _
    $region35: #{tpu_custom_call.1} parent=1 // pred_check_branch
      %176 = sbr.rel (0) target = $region37
    $region36: #{tpu_custom_call.1} parent=1 // pred_region
      %178 = vsyncadd [#allocation4], 0
      %s179 = sshll.u32 [#allocation10], 4
      %s180 = int_to_ptr.vmem [resolvable:$true] %s179
      %s181 = sshll.u32 %s4, 4
      %s182 = int_to_ptr.hbm [resolvable:$true] %s181
      %187 = dma.vmem_to_hbm [thread:$0]  %s180, 1024, %s182, [#allocation4], 128, 128, 8
    $region37: #{tpu_custom_call.1} parent=1 // pred_fallthru
      _
    // Predicated region
    $region38: #{tpu_custom_call.1} parent=1 // pred_check
      _
    $region39: #{tpu_custom_call.1} parent=1 // pred_check_branch
      %189 = sbr.rel (0) target = $region41
    $region40: #{tpu_custom_call.1} parent=1 // pred_region
      %191 = dma.done [#allocation4], 1024
    $region41: #{tpu_custom_call.1} parent=1 // pred_fallthru
      _
    %192 = vsyncpa [#allocation3], 1
    %193 = vsyncpa [#allocation6], 1
    %194 = vsyncpa [#allocation9], 1
    %195 = vsyncpa [#allocation4], 1

</llo_original>
